<compile_context>
chip_gen: v5e
topology: v5e:2x2
jax: 0.10.0
libtpu: 0.0.40
codegen_flags: <defaults>
</compile_context>

<pallas_src>
import functools

import jax
import jax.numpy as jnp
from jax.experimental import pallas as pl
from jax.experimental.pallas import tpu as pltpu

_EPS = 1e-5


def _round_up(x, m):
    return (x + m - 1) // m * m


def mlp_block_kernel(xc_ref, w_ref, o_ref, *, itp, np_, batch):
    # xc_ref: (B, ITP)        concat[x, temb], zero-padded; lane IT is the bias "ones"
    #                          lane (forced to 1.0 by gamma=0, beta=1 in the BN params).
    # w_ref : (ITP+NP+8, P)   rows [0:ITP]        fused block1+temp_proj weight, bias in row IT
    #                          rows [ITP:ITP+NP]   block2 weight, bias in row N
    #                          rows [ITP+NP:+8]    [gamma_a, beta_a, g2, be2, 0, 0, 0, 0]
    xc = xc_ref[...]
    pr = itp + np_
    pv = w_ref[pr:pr + 8, :]          # one aligned 8-row load for all vector params
    gamma_a = pv[0:1, :itp]
    beta_a = pv[1:2, :itp]
    g2 = pv[2:3, :np_]
    be2 = pv[3:4, :np_]

    inv_b = jnp.float32(1.0 / batch)

    # --- stage 1: one-pass BN + ReLU on concat[x, temb]; fused matmul (bias folded) ---
    m1 = jnp.sum(xc, axis=0, keepdims=True) * inv_b
    q1 = jnp.sum(xc * xc, axis=0, keepdims=True) * inv_b
    a1 = gamma_a * jax.lax.rsqrt(q1 - m1 * m1 + _EPS)
    c1 = beta_a - m1 * a1
    h0 = jnp.maximum(xc * a1 + c1, 0.0)                       # lane IT == 1.0 (bias lane)
    h = jnp.dot(h0, w_ref[:itp, :np_], preferred_element_type=jnp.float32)

    # --- stage 2 (block2): one-pass BN + ReLU; matmul (bias folded) ---
    m2 = jnp.sum(h, axis=0, keepdims=True) * inv_b
    q2 = jnp.sum(h * h, axis=0, keepdims=True) * inv_b
    a2 = g2 * jax.lax.rsqrt(q2 - m2 * m2 + _EPS)
    c2 = be2 - m2 * a2
    h2 = jnp.maximum(h * a2 + c2, 0.0)                        # lane N == 1.0 (bias lane)
    o_ref[...] = jnp.dot(h2, w_ref[itp:itp + np_, :np_],
                         preferred_element_type=jnp.float32)


def pack_params(params, input_size, t_size):
    """One-time packing of every static parameter into a single weight/param slab.

    Must be called OUTSIDE the per-call hot path; the result is reused across calls.
    """
    f32 = jnp.float32
    N = params["w1t"].shape[1]
    IT = input_size + t_size
    ITP = _round_up(IT + 1, 128)      # +1 reserves the "ones" lane for the folded bias
    NP = _round_up(N + 1, 128)
    P = max(ITP, NP)

    # Fused block1 + temp_proj weight; combined bias folded into row IT (ones lane).
    w_a = jnp.concatenate([params["w1t"], params["wtt"]], axis=0).astype(f32)     # (IT, N)
    b_a = (params["b1"] + params["bt"]).reshape(1, N).astype(f32)
    w1_aug = jnp.pad(jnp.concatenate([w_a, b_a], axis=0),
                     ((0, ITP - (IT + 1)), (0, P - N)))                            # (ITP, P)

    # block2 weight; bias folded into row N (ones lane of the second stage).
    w2_aug = jnp.pad(jnp.concatenate([params["w2t"].astype(f32),
                                      params["b2"].reshape(1, N).astype(f32)],
                                     axis=0),
                     ((0, NP - (N + 1)), (0, P - N)))                              # (NP, P)

    def param_row(vals, ones_idx=None):
        r = jnp.zeros((P,), f32).at[:vals.size].set(vals.reshape(-1).astype(f32))
        if ones_idx is not None:
            r = r.at[ones_idx].set(1.0)
        return r.reshape(1, P)

    gamma_a = jnp.concatenate([params["g1"], params["gt"]], axis=1)                # (1, IT)
    beta_a = jnp.concatenate([params["be1"], params["bet"]], axis=1)
    pv = jnp.concatenate(
        [param_row(gamma_a),                 # gamma = 0 on ones/padding lanes
         param_row(beta_a, ones_idx=IT),     # beta  = 1 on ones lane -> h0[:, IT] == 1
         param_row(params["g2"]),
         param_row(params["be2"], ones_idx=N),
         jnp.zeros((4, P), f32)],            # pad param block to 8 sublane rows
        axis=0)

    w_slab = jnp.concatenate([w1_aug, w2_aug, pv], axis=0)                          # (ITP+NP+8, P)
    dims = dict(it=IT, itp=ITP, n=N, np_=NP)
    return w_slab, dims


def mlp_block(x, temb, w_slab, *, it, itp, n, np_):
    """Per-call forward.  Only xc is built here; params were packed once in pack_params.

    Returns the lane-padded (B, NP) output; columns [:n] hold the real result.
    """
    del n  # kept in the signature for documentation / downstream slicing
    B = x.shape[0]
    xc = jnp.pad(jnp.concatenate([x, temb], axis=1), ((0, 0), (0, itp - it)))
    kernel = functools.partial(mlp_block_kernel, itp=itp, np_=np_, batch=B)
    vmem = pl.BlockSpec(memory_space=pltpu.MemorySpace.VMEM)
    return pl.pallas_call(
        kernel,
        out_shape=jax.ShapeDtypeStruct((B, np_), jnp.float32),
        in_specs=[vmem, vmem],
        out_specs=vmem,
    )(xc, w_slab)


def _init_params(key, input_size, output_size, t_size):
    """Deterministic synthetic init mimicking PyTorch default Linear init (uniform)."""
    ks = jax.random.split(key, 6)

    def linear(kw, kb, fan_in, fan_out):
        bound = 1.0 / (fan_in ** 0.5)
        w = jax.random.uniform(kw, (fan_out, fan_in), jnp.float32, -bound, bound)
        b = jax.random.uniform(kb, (fan_out,), jnp.float32, -bound, bound)
        return w.T, b.reshape(1, fan_out)  # pre-transposed weight, 2D bias

    w1t, b1 = linear(ks[0], ks[1], input_size, output_size)
    wtt, bt = linear(ks[2], ks[3], t_size, output_size)
    w2t, b2 = linear(ks[4], ks[5], output_size, output_size)

    ones = lambda f: jnp.ones((1, f), jnp.float32)
    zeros = lambda f: jnp.zeros((1, f), jnp.float32)
    return dict(
        g1=ones(input_size), be1=zeros(input_size), w1t=w1t, b1=b1,
        gt=ones(t_size), bet=zeros(t_size), wtt=wtt, bt=bt,
        g2=ones(output_size), be2=zeros(output_size), w2t=w2t, b2=b2,
    )


def _reference(x, temb, p):
    """Pure-JAX reference of the PyTorch forward (training-mode BatchNorm), unfused."""
    def bn_relu(v, g, b):
        m = v.mean(0, keepdims=True)
        var = ((v - m) ** 2).mean(0, keepdims=True)
        return jnp.maximum((v - m) / jnp.sqrt(var + _EPS) * g + b, 0.0)

    h1 = bn_relu(x, p["g1"], p["be1"]) @ p["w1t"] + p["b1"]
    tp = bn_relu(temb, p["gt"], p["bet"]) @ p["wtt"] + p["bt"]
    h = h1 + tp
    return bn_relu(h, p["g2"], p["be2"]) @ p["w2t"] + p["b2"]


if __name__ == "__main__":
    input_size, output_size, t_size, batch = 32, 64, 16, 8

    key = jax.random.PRNGKey(0)
    kx, kt, kp = jax.random.split(key, 3)
    x = jax.random.normal(kx, (batch, input_size), jnp.float32)
    temb = jax.random.normal(kt, (batch, t_size), jnp.float32)
    params = _init_params(kp, input_size, output_size, t_size)

    # One-time parameter packing (hoisted out of the per-call hot path).
    w_slab, dims = pack_params(params, input_size, t_size)
    w_slab = jax.block_until_ready(jax.device_put(w_slab))

    fwd = jax.jit(functools.partial(mlp_block, **dims))
    out_p = jax.block_until_ready(fwd(x, temb, w_slab))
    out = out_p[:, :output_size]            # single slice at the consumer

    ref = _reference(x, temb, params)
    assert out.shape == (batch, output_size), out.shape
    assert jnp.allclose(out, ref, atol=1e-4, rtol=1e-4), float(jnp.abs(out - ref).max())

    print("KERNEL_OK")
</pallas_src>

<mosaic_0001>
module attributes {stable_mosaic.version = 11 : i64} {
  func.func @mlp_block_kernel(%arg0: memref<8x128xf32, #tpu.memory_space<vmem>>, %arg1: memref<264x128xf32, #tpu.memory_space<vmem>>, %arg2: memref<8x128xf32, #tpu.memory_space<vmem>>) attributes {dimension_semantics = [], scalar_prefetch = 0 : i64, scratch_operands = 0 : i64, tpu.core_type = #tpu.core_type<tc>} {
    %c0 = arith.constant 0 : index
    %c0_0 = arith.constant 0 : index
    %0 = vector.load %arg0[%c0, %c0_0] : memref<8x128xf32, #tpu.memory_space<vmem>>, vector<8x128xf32>
    %c256 = arith.constant 256 : index
    %c0_1 = arith.constant 0 : index
    %1 = vector.load %arg1[%c256, %c0_1] : memref<264x128xf32, #tpu.memory_space<vmem>>, vector<8x128xf32>
    %2 = vector.extract_strided_slice %1 {offsets = [0, 0], sizes = [1, 128], strides = [1, 1]} : vector<8x128xf32> to vector<1x128xf32>
    %3 = vector.extract_strided_slice %1 {offsets = [1, 0], sizes = [1, 128], strides = [1, 1]} : vector<8x128xf32> to vector<1x128xf32>
    %4 = vector.extract_strided_slice %1 {offsets = [2, 0], sizes = [1, 128], strides = [1, 1]} : vector<8x128xf32> to vector<1x128xf32>
    %5 = vector.extract_strided_slice %1 {offsets = [3, 0], sizes = [1, 128], strides = [1, 1]} : vector<8x128xf32> to vector<1x128xf32>
    %cst = arith.constant dense<0.000000e+00> : vector<128xf32>
    %6 = vector.multi_reduction <add>, %0, %cst [0] : vector<8x128xf32> to vector<128xf32>
    %7 = vector.shape_cast %6 : vector<128xf32> to vector<1x128xf32>
    %cst_2 = arith.constant 1.250000e-01 : f32
    %8 = vector.broadcast %cst_2 : f32 to vector<1x128xf32>
    %9 = arith.mulf %7, %8 : vector<1x128xf32>
    %10 = arith.mulf %0, %0 : vector<8x128xf32>
    %cst_3 = arith.constant dense<0.000000e+00> : vector<128xf32>
    %11 = vector.multi_reduction <add>, %10, %cst_3 [0] : vector<8x128xf32> to vector<128xf32>
    %12 = vector.shape_cast %11 : vector<128xf32> to vector<1x128xf32>
    %cst_4 = arith.constant 1.250000e-01 : f32
    %13 = vector.broadcast %cst_4 : f32 to vector<1x128xf32>
    %14 = arith.mulf %12, %13 : vector<1x128xf32>
    %15 = arith.mulf %9, %9 : vector<1x128xf32>
    %16 = arith.subf %14, %15 : vector<1x128xf32>
    %cst_5 = arith.constant 9.99999974E-6 : f32
    %17 = vector.broadcast %cst_5 : f32 to vector<1x128xf32>
    %18 = arith.addf %16, %17 : vector<1x128xf32>
    %19 = math.rsqrt %18 : vector<1x128xf32>
    %20 = arith.mulf %2, %19 : vector<1x128xf32>
    %21 = arith.mulf %9, %20 : vector<1x128xf32>
    %22 = arith.subf %3, %21 : vector<1x128xf32>
    %23 = vector.broadcast %20 : vector<1x128xf32> to vector<8x128xf32>
    %24 = arith.mulf %0, %23 : vector<8x128xf32>
    %25 = vector.broadcast %22 : vector<1x128xf32> to vector<8x128xf32>
    %26 = arith.addf %24, %25 : vector<8x128xf32>
    %cst_6 = arith.constant 0.000000e+00 : f32
    %27 = vector.broadcast %cst_6 : f32 to vector<8x128xf32>
    %28 = arith.maximumf %26, %27 : vector<8x128xf32>
    %c0_7 = arith.constant 0 : index
    %c0_8 = arith.constant 0 : index
    %29 = vector.load %arg1[%c0_7, %c0_8] : memref<264x128xf32, #tpu.memory_space<vmem>>, vector<128x128xf32>
    %cst_9 = arith.constant dense<0.000000e+00> : vector<8x128xf32>
    %30 = tpu.matmul %28, %29, %cst_9 {dimension_numbers = #tpu.dot_dimension_numbers<[1], [0], [0], [1], [0, 0, 1, 1], [], []>} : vector<8x128xf32>, vector<128x128xf32>, vector<8x128xf32> -> vector<8x128xf32>
    %cst_10 = arith.constant dense<0.000000e+00> : vector<128xf32>
    %31 = vector.multi_reduction <add>, %30, %cst_10 [0] : vector<8x128xf32> to vector<128xf32>
    %32 = vector.shape_cast %31 : vector<128xf32> to vector<1x128xf32>
    %cst_11 = arith.constant 1.250000e-01 : f32
    %33 = vector.broadcast %cst_11 : f32 to vector<1x128xf32>
    %34 = arith.mulf %32, %33 : vector<1x128xf32>
    %35 = arith.mulf %30, %30 : vector<8x128xf32>
    %cst_12 = arith.constant dense<0.000000e+00> : vector<128xf32>
    %36 = vector.multi_reduction <add>, %35, %cst_12 [0] : vector<8x128xf32> to vector<128xf32>
    %37 = vector.shape_cast %36 : vector<128xf32> to vector<1x128xf32>
    %cst_13 = arith.constant 1.250000e-01 : f32
    %38 = vector.broadcast %cst_13 : f32 to vector<1x128xf32>
    %39 = arith.mulf %37, %38 : vector<1x128xf32>
    %40 = arith.mulf %34, %34 : vector<1x128xf32>
    %41 = arith.subf %39, %40 : vector<1x128xf32>
    %cst_14 = arith.constant 9.99999974E-6 : f32
    %42 = vector.broadcast %cst_14 : f32 to vector<1x128xf32>
    %43 = arith.addf %41, %42 : vector<1x128xf32>
    %44 = math.rsqrt %43 : vector<1x128xf32>
    %45 = arith.mulf %4, %44 : vector<1x128xf32>
    %46 = arith.mulf %34, %45 : vector<1x128xf32>
    %47 = arith.subf %5, %46 : vector<1x128xf32>
    %48 = vector.broadcast %45 : vector<1x128xf32> to vector<8x128xf32>
    %49 = arith.mulf %30, %48 : vector<8x128xf32>
    %50 = vector.broadcast %47 : vector<1x128xf32> to vector<8x128xf32>
    %51 = arith.addf %49, %50 : vector<8x128xf32>
    %cst_15 = arith.constant 0.000000e+00 : f32
    %52 = vector.broadcast %cst_15 : f32 to vector<8x128xf32>
    %53 = arith.maximumf %51, %52 : vector<8x128xf32>
    %c128 = arith.constant 128 : index
    %c0_16 = arith.constant 0 : index
    %54 = vector.load %arg1[%c128, %c0_16] : memref<264x128xf32, #tpu.memory_space<vmem>>, vector<128x128xf32>
    %cst_17 = arith.constant dense<0.000000e+00> : vector<8x128xf32>
    %55 = tpu.matmul %53, %54, %cst_17 {dimension_numbers = #tpu.dot_dimension_numbers<[1], [0], [0], [1], [0, 0, 1, 1], [], []>} : vector<8x128xf32>, vector<128x128xf32>, vector<8x128xf32> -> vector<8x128xf32>
    %c0_18 = arith.constant 0 : index
    %c0_19 = arith.constant 0 : index
    %56 = vector.load %arg2[%c0_18, %c0_19] : memref<8x128xf32, #tpu.memory_space<vmem>>, vector<8x128xf32>
    tpu.vector_store %arg2[%c0_18, %c0_19], %55 {strides = array<i32>} : memref<8x128xf32, #tpu.memory_space<vmem>>, vector<8x128xf32>,
    return
  }
}

</mosaic_0001>

<llo_original>
// kernel: mlp_block.1
$region0: #{mlp_block.1}
  #allocation0 [shape = 'u32[]', space=smem, size = 0x4, offset = 0x4, fixed_abs, tag = 'smem constant byte address 0x4 - core index']
  #allocation1 [shape = 'u32[72,128]{1,0:T(1,128)}', space=vmem, size = 0x9000, scoped, tag = 'internal scratch']
  %s0 = inlined_call_operand.vmem [shape: f32[8,128], index: 0, kind: input, shape index: {}]
  %s1 = inlined_call_operand.hbm [shape: f32[264,128], index: 1, kind: input, shape index: {}]
  %s2 = inlined_call_operand.hbm [shape: f32[8,128], index: 2, kind: output, shape index: {}]
  %s3 = sld [smem:[#allocation0]]
  $region22: #{mlp_block.1} parent=0
    _
  %s5 = ssub.s32 1, %s3
  %s6 = scalar_select 0, %s5, %s3
  $region1: #{mlp_block.1} parent=0
    #allocation2 [shape = 'u8[135168]{0}', space=vmem, size = 0x21000, scoped, tag = 'input window, operand 1, single buffered']
    #allocation3 [shape = 's32[1]{0}', space=sflag, size = 0x4, scoped, tag = 'scoped memory for mlp_block.1']
    #allocation4 [shape = 's32[1]{0}', space=sflag, size = 0x4, scoped, tag = 'scoped memory for mlp_block.1']
    #allocation5 [shape = 'u8[4096]{0}', space=vmem, size = 0x1000, scoped, tag = 'output window, operand 0, single buffered']
    %7 = vsyncpa [#allocation3], 0
    %8 = vsyncpa [#allocation4], 0
    // Predicated region
    $region2: #{mlp_block.1} parent=1 // pred_check
      _
    $region3: #{mlp_block.1} parent=1 // pred_check_branch
      %10 = sbr.rel (0) target = $region5
    $region4: #{mlp_block.1} parent=1 // pred_region
      _
    $region5: #{mlp_block.1} parent=1 // pred_fallthru
      _
    // Predicated region
    $region6: #{mlp_block.1} parent=1 // pred_check
      _
    $region7: #{mlp_block.1} parent=1 // pred_check_branch
      %12 = sbr.rel (0) target = $region9
    $region8: #{mlp_block.1} parent=1 // pred_region
      %14 = vsyncadd [#allocation3], 0
      %s15 = sshll.u32 %s1, 4
      %s16 = int_to_ptr.hbm [resolvable:$true] %s15
      %s17 = sshll.u32 [#allocation2], 4
      %s18 = int_to_ptr.vmem [resolvable:$true] %s17
      %23 = dma.hbm_to_vmem [thread:$0]  %s16, 4224, %s18, [#allocation3], 128, 128, 8
    $region9: #{mlp_block.1} parent=1 // pred_fallthru
      _
    // Predicated region
    $region10: #{mlp_block.1} parent=1 // pred_check
      _
    $region11: #{mlp_block.1} parent=1 // pred_check_branch
      %25 = sbr.rel (0) target = $region13
    $region12: #{mlp_block.1} parent=1 // pred_region
      %27 = dma.done [#allocation3], 4224
    $region13: #{mlp_block.1} parent=1 // pred_fallthru
      _
    %v28 = vld [vmem:[%s0] sm:$0xff]
    %v29 = vld [vmem:[#allocation2 + $0x100] sm:$0xff]
    %v30 = vrot.slane %v28, 4
    %v31 = vadd.f32 %v28, %v30
    %v32 = vrot.slane %v31, 2
    %v33 = vadd.f32 %v31, %v32
    %v34 = vrot.slane %v33, 1
    %v35 = vadd.f32 %v33, %v34
    %v36 = vmul.f32 %v35, 0.125
    %v37 = vmul.f32 %v28, %v28
    %v38 = vrot.slane %v37, 4
    %v39 = vadd.f32 %v37, %v38
    %v40 = vrot.slane %v39, 2
    %v41 = vadd.f32 %v39, %v40
    %v42 = vrot.slane %v41, 1
    %v43 = vadd.f32 %v41, %v42
    %v44 = vmul.f32 %v43, 0.125
    %v45 = vmul.f32 %v36, %v36
    %v46 = vsub.f32 %v44, %v45
    %v47 = vadd.f32 %v46, 1e-05
    %v48 = vrsqrt.pop %v47
    %v49 = vmul.f32 %v48, %v47
    %v50 = vmul.f32 %v49, %v48
    %v51 = vmul.f32 0.5, %v50
    %v52 = vsub.f32 1.5, %v51
    %v53 = vmul.f32 %v48, %v52
    %vm54 = vweird.f32 %v47
    %vm55 = vweird.f32 %v48
    %vm56 = vmor %vm54, %vm55
    %v57 = vsel %vm56, %v48, %v53
    %v58 = vmul.f32 %v29, %v57
    %v59 = vmul.f32 %v36, %v58
    %v61 = vrot.slane %v59, 7
    %v63 = vsub.f32 %v29, %v61
    %v64 = vperm.slane %v58, 0
    %v65 = vmul.f32 %v28, %v64
    %v66 = vperm.slane %v63, 1
    %v67 = vadd.f32 %v65, %v66
    %v68 = vmax.f32 %v67, 0.0
    %v69 = vld [vmem:[#allocation2] sm:$0xff]
    %v70 = vld [vmem:[#allocation2 + $0x8] sm:$0xff]
    %v71 = vld [vmem:[#allocation2 + $0x10] sm:$0xff]
    %v72 = vld [vmem:[#allocation2 + $0x18] sm:$0xff]
    %v73 = vld [vmem:[#allocation2 + $0x20] sm:$0xff]
    %v74 = vld [vmem:[#allocation2 + $0x28] sm:$0xff]
    %v75 = vld [vmem:[#allocation2 + $0x30] sm:$0xff]
    %v76 = vld [vmem:[#allocation2 + $0x38] sm:$0xff]
    %v77 = vld [vmem:[#allocation2 + $0x40] sm:$0xff]
    %v78 = vld [vmem:[#allocation2 + $0x48] sm:$0xff]
    %v79 = vld [vmem:[#allocation2 + $0x50] sm:$0xff]
    %v80 = vld [vmem:[#allocation2 + $0x58] sm:$0xff]
    %v81 = vld [vmem:[#allocation2 + $0x60] sm:$0xff]
    %v82 = vld [vmem:[#allocation2 + $0x68] sm:$0xff]
    %v83 = vld [vmem:[#allocation2 + $0x70] sm:$0xff]
    %v84 = vld [vmem:[#allocation2 + $0x78] sm:$0xff]
    %85 = vmatpush.msra.mxu0 %v84
    %86 = vmatpush.msra.mxu0 %v83
    %87 = vmatpush.msra.mxu0 %v82
    %88 = vmatpush.msra.mxu0 %v81
    %89 = vmatpush.msra.mxu0 %v80
    %90 = vmatpush.msra.mxu0 %v79
    %91 = vmatpush.msra.mxu0 %v78
    %92 = vmatpush.msra.mxu0 %v77
    %93 = vmatpush.msra.mxu0 %v76
    %94 = vmatpush.msra.mxu0 %v75
    %95 = vmatpush.msra.mxu0 %v74
    %96 = vmatpush.msra.mxu0 %v73
    %97 = vmatpush.msra.mxu0 %v72
    %98 = vmatpush.msra.mxu0 %v71
    %99 = vmatpush.msra.mxu0 %v70
    %100 = vmatpush.msra.mxu0 %v69
    %101 = vmatmul.f32.gmra.mxu0 %v68
    %v102 = vpop.f32.mrf.mxu0
    %v103 = vadd.f32 0.0, %v102
    %104 = vdwg.mxu0
    %v105 = vrot.slane %v103, 4
    %v106 = vadd.f32 %v103, %v105
    %v107 = vrot.slane %v106, 2
    %v108 = vadd.f32 %v106, %v107
    %v109 = vrot.slane %v108, 1
    %v110 = vadd.f32 %v108, %v109
    %v111 = vmul.f32 %v110, 0.125
    %v112 = vmul.f32 %v103, %v103
    %v113 = vrot.slane %v112, 4
    %v114 = vadd.f32 %v112, %v113
    %v115 = vrot.slane %v114, 2
    %v116 = vadd.f32 %v114, %v115
    %v117 = vrot.slane %v116, 1
    %v118 = vadd.f32 %v116, %v117
    %v119 = vmul.f32 %v118, 0.125
    %v120 = vmul.f32 %v111, %v111
    %v121 = vsub.f32 %v119, %v120
    %v122 = vadd.f32 %v121, 1e-05
    %v123 = vrsqrt.pop %v122
    %v124 = vmul.f32 %v123, %v122
    %v125 = vmul.f32 %v124, %v123
    %v126 = vmul.f32 0.5, %v125
    %v127 = vsub.f32 1.5, %v126
    %v128 = vmul.f32 %v123, %v127
    %vm129 = vweird.f32 %v122
    %vm130 = vweird.f32 %v123
    %vm131 = vmor %vm129, %vm130
    %v132 = vsel %vm131, %v123, %v128
    %v133 = vmul.f32 %v29, %v132
    %v134 = vmul.f32 %v111, %v133
    %v136 = vrot.slane %v134, 7
    %v138 = vsub.f32 %v29, %v136
    %v139 = vperm.slane %v133, 2
    %v140 = vmul.f32 %v103, %v139
    %v141 = vperm.slane %v138, 3
    %v142 = vadd.f32 %v140, %v141
    %v143 = vmax.f32 %v142, 0.0
    %v144 = vld [vmem:[#allocation2 + $0x80] sm:$0xff]
    %v145 = vld [vmem:[#allocation2 + $0x88] sm:$0xff]
    %v146 = vld [vmem:[#allocation2 + $0x90] sm:$0xff]
    %v147 = vld [vmem:[#allocation2 + $0x98] sm:$0xff]
    %v148 = vld [vmem:[#allocation2 + $0xa0] sm:$0xff]
    %v149 = vld [vmem:[#allocation2 + $0xa8] sm:$0xff]
    %v150 = vld [vmem:[#allocation2 + $0xb0] sm:$0xff]
    %v151 = vld [vmem:[#allocation2 + $0xb8] sm:$0xff]
    %v152 = vld [vmem:[#allocation2 + $0xc0] sm:$0xff]
    %v153 = vld [vmem:[#allocation2 + $0xc8] sm:$0xff]
    %v154 = vld [vmem:[#allocation2 + $0xd0] sm:$0xff]
    %v155 = vld [vmem:[#allocation2 + $0xd8] sm:$0xff]
    %v156 = vld [vmem:[#allocation2 + $0xe0] sm:$0xff]
    %v157 = vld [vmem:[#allocation2 + $0xe8] sm:$0xff]
    %v158 = vld [vmem:[#allocation2 + $0xf0] sm:$0xff]
    %v159 = vld [vmem:[#allocation2 + $0xf8] sm:$0xff]
    %160 = vmatpush.msra.mxu0 %v159
    %161 = vmatpush.msra.mxu0 %v158
    %162 = vmatpush.msra.mxu0 %v157
    %163 = vmatpush.msra.mxu0 %v156
    %164 = vmatpush.msra.mxu0 %v155
    %165 = vmatpush.msra.mxu0 %v154
    %166 = vmatpush.msra.mxu0 %v153
    %167 = vmatpush.msra.mxu0 %v152
    %168 = vmatpush.msra.mxu0 %v151
    %169 = vmatpush.msra.mxu0 %v150
    %170 = vmatpush.msra.mxu0 %v149
    %171 = vmatpush.msra.mxu0 %v148
    %172 = vmatpush.msra.mxu0 %v147
    %173 = vmatpush.msra.mxu0 %v146
    %174 = vmatpush.msra.mxu0 %v145
    %175 = vmatpush.msra.mxu0 %v144
    %176 = vmatmul.f32.gmra.mxu0 %v143
    %v177 = vpop.f32.mrf.mxu0
    %v178 = vadd.f32 0.0, %v177
    %179 = vdwg.mxu0
    %180 = vst [vmem:[#allocation5] sm:$0xff] %v178
    // Predicated region
    $region14: #{mlp_block.1} parent=1 // pred_check
      _
    $region15: #{mlp_block.1} parent=1 // pred_check_branch
      %182 = sbr.rel (0) target = $region17
    $region16: #{mlp_block.1} parent=1 // pred_region
      %184 = vsyncadd [#allocation4], 0
      %s186 = sshll.u32 [#allocation5], 4
      %s187 = int_to_ptr.vmem [resolvable:$true] %s186
      %s188 = sshll.u32 %s2, 4
      %s189 = int_to_ptr.hbm [resolvable:$true] %s188
      %191 = dma.vmem_to_hbm [thread:$0]  %s187, 128, %s189, [#allocation4]
    $region17: #{mlp_block.1} parent=1 // pred_fallthru
      _
    // Predicated region
    $region18: #{mlp_block.1} parent=1 // pred_check
      _
    $region19: #{mlp_block.1} parent=1 // pred_check_branch
      %193 = sbr.rel (0) target = $region21
    $region20: #{mlp_block.1} parent=1 // pred_region
      %195 = dma.done [#allocation4], 128
    $region21: #{mlp_block.1} parent=1 // pred_fallthru
      _
    %196 = vsyncpa [#allocation3], 1
    %197 = vsyncpa [#allocation4], 1

</llo_original>
